<compile_context>
chip_gen: v6e
topology: v6e:2x2x1
jax: 0.10.0
libtpu: 0.0.40
codegen_flags: <defaults>
</compile_context>

<pallas_src>
import functools
import math

import jax
import jax.numpy as jnp
from jax import lax
from jax.experimental import pallas as pl
from jax.experimental.pallas import tpu as pltpu

LANES = 128
SUBLANES = 8
MAX_TILE_ROWS = 8192            # 8192 x 128 f32 = 4 MiB per input block
VMEM_LIMIT_BYTES = 32 * 1024 * 1024


def _dice_sums_kernel(p_ref, t_ref, inter_ref, union_ref, *,
                      tile_rows, tiles_per_split, n_tiles, valid_rows_last,
                      needs_row_mask):
    i = pl.program_id(1)   # streaming step within the split (reduction axis)

    @pl.when(i == 0)
    def _():
        inter_ref[...] = jnp.zeros_like(inter_ref)
        union_ref[...] = jnp.zeros_like(union_ref)

    x = p_ref[...].astype(jnp.float32)
    # sigmoid(x) = 0.5 * (1 + tanh(x/2)) : single EUP push per vreg.
    pre = 0.5 * jnp.tanh(0.5 * x) + 0.5
    tar = t_ref[...].astype(jnp.float32)

    fold = tile_rows // SUBLANES

    def accumulate(pre_v, tar_v):
        # (tile_rows, 128) -> (fold, 8, 128) is a vreg-boundary regroup; the
        # leading-axis sums are plain VALU adds (no XLU), accumulated into the
        # vreg-sized, VMEM-resident output blocks.
        inter_ref[...] += jnp.sum(
            (pre_v * tar_v).reshape(fold, SUBLANES, LANES), axis=0)
        union_ref[...] += jnp.sum(
            (pre_v + tar_v).reshape(fold, SUBLANES, LANES), axis=0)

    if needs_row_mask:
        # Only the very last logical block can contain rows past the end of
        # the aligned slab; every other step takes the unmasked fast path.
        c = pl.program_id(0)
        blk = c * tiles_per_split + i
        is_last = blk == n_tiles - 1

        @pl.when(jnp.logical_not(is_last))
        def _():
            accumulate(pre, tar)

        @pl.when(is_last)
        def _():
            row_ids = lax.broadcasted_iota(jnp.int32, pre.shape, 0)
            valid = row_ids < valid_rows_last   # static bound, row-level only
            # where-after-sigmoid so NaN/Inf garbage rows contribute exactly 0.
            accumulate(jnp.where(valid, pre, 0.0), jnp.where(valid, tar, 0.0))
    else:
        accumulate(pre, tar)


@functools.partial(jax.jit, static_argnames=("epsilon",))
def dice_loss(predict, target, epsilon=1.0):
    assert predict.shape == target.shape, (
        "the size of predict and target must be equal."
    )
    total = math.prod(predict.shape)

    p_flat = predict.reshape(-1)
    t_flat = target.reshape(-1)

    # Align the kernel-visible prefix to whole (8, 128) vreg groups; the tiny
    # ragged tail (<= 1023 elements) is handled in plain JAX below — no
    # full-array pad copy and no lane masking in the kernel.
    rows_aligned = (total // (SUBLANES * LANES)) * SUBLANES
    aligned_elems = rows_aligned * LANES
    tail_count = total - aligned_elems

    if tail_count:
        tail_pre = jax.nn.sigmoid(p_flat[aligned_elems:].astype(jnp.float32))
        tail_tar = t_flat[aligned_elems:].astype(jnp.float32)
        inter_tail = jnp.sum(tail_pre * tail_tar)
        union_tail = jnp.sum(tail_pre + tail_tar)
    else:
        inter_tail = jnp.float32(0.0)
        union_tail = jnp.float32(0.0)

    if rows_aligned > 0:
        p2d = p_flat[:aligned_elems].reshape(rows_aligned, LANES)
        t2d = t_flat[:aligned_elems].reshape(rows_aligned, LANES)

        tile_rows = rows_aligned if rows_aligned <= MAX_TILE_ROWS else MAX_TILE_ROWS
        n_tiles = -(-rows_aligned // tile_rows)          # cdiv
        # Only use the 2-way split when it is exact (no clamped duplicate
        # block reads / fully-masked steps).
        num_splits = 2 if (n_tiles >= 2 and n_tiles % 2 == 0) else 1
        tiles_per_split = n_tiles // num_splits
        valid_rows_last = rows_aligned - (n_tiles - 1) * tile_rows
        needs_row_mask = (n_tiles * tile_rows) != rows_aligned

        def in_map(c, i):
            return (c * tiles_per_split + i, 0)

        kernel = functools.partial(
            _dice_sums_kernel,
            tile_rows=tile_rows,
            tiles_per_split=tiles_per_split,
            n_tiles=n_tiles,
            valid_rows_last=valid_rows_last,
            needs_row_mask=needs_row_mask,
        )

        inter_parts, union_parts = pl.pallas_call(
            kernel,
            out_shape=(
                jax.ShapeDtypeStruct((num_splits * SUBLANES, LANES), jnp.float32),
                jax.ShapeDtypeStruct((num_splits * SUBLANES, LANES), jnp.float32),
            ),
            grid_spec=pltpu.PrefetchScalarGridSpec(
                num_scalar_prefetch=0,
                grid=(num_splits, tiles_per_split),
                in_specs=[
                    pl.BlockSpec((tile_rows, LANES), in_map),
                    pl.BlockSpec((tile_rows, LANES), in_map),
                ],
                out_specs=(
                    pl.BlockSpec((SUBLANES, LANES), lambda c, i: (c, 0)),
                    pl.BlockSpec((SUBLANES, LANES), lambda c, i: (c, 0)),
                ),
            ),
            compiler_params=pltpu.CompilerParams(
                dimension_semantics=("parallel", "arbitrary"),
                vmem_limit_bytes=VMEM_LIMIT_BYTES,
            ),
        )(p2d, t2d)

        inter = jnp.sum(inter_parts)
        union = jnp.sum(union_parts)
    else:
        # Degenerate tiny input: everything already summed in the tail path.
        inter = jnp.float32(0.0)
        union = jnp.float32(0.0)

    inter = inter + inter_tail
    union = union + union_tail

    eps = jnp.float32(epsilon)
    return 1.0 - 2.0 * (inter + eps) / (union + eps)


def dice_loss_ref(predict, target, epsilon=1.0):
    """Pure-JAX reference mirroring the PyTorch module."""
    num = predict.shape[0]
    pre = jax.nn.sigmoid(predict).reshape(num, -1)
    tar = target.reshape(num, -1)
    inter = jnp.sum(jnp.sum(pre * tar, axis=-1))
    union = jnp.sum(jnp.sum(pre + tar, axis=-1))
    return 1.0 - 2.0 * (inter + epsilon) / (union + epsilon)


if __name__ == "__main__":
    key = jax.random.PRNGKey(0)
    k1, k2 = jax.random.split(key)

    # Small NCHW shapes: batch=2, channels=4, spatial=16x16.
    predict = jax.random.normal(k1, (2, 4, 16, 16), dtype=jnp.float32)
    # target is a binary mask, as typical for dice loss.
    target = (jax.random.uniform(k2, (2, 4, 16, 16)) > 0.5).astype(jnp.float32)

    out = dice_loss(predict, target)
    out = jax.block_until_ready(out)

    ref = dice_loss_ref(predict, target)
    assert jnp.allclose(out, ref, atol=1e-5, rtol=1e-5), (out, ref)

    print("KERNEL_OK")
</pallas_src>

<mosaic_0001>
module attributes {stable_mosaic.version = 11 : i64} {
  func.func @_dice_sums_kernel(%arg0: i32, %arg1: i32, %arg2: memref<16x128xf32, #tpu.memory_space<vmem>>, %arg3: memref<16x128xf32, #tpu.memory_space<vmem>>, %arg4: memref<8x128xf32, #tpu.memory_space<vmem>>, %arg5: memref<8x128xf32, #tpu.memory_space<vmem>>) attributes {dimension_semantics = [#tpu.dimension_semantics<parallel>, #tpu.dimension_semantics<arbitrary>], iteration_bounds = array<i64: 1, 1>, scalar_prefetch = 0 : i64, scratch_operands = 0 : i64, tpu.core_type = #tpu.core_type<tc>, window_params = [{transform_indices = @transform_0, window_bounds = array<i64: 16, 128>}, {transform_indices = @transform_1, window_bounds = array<i64: 16, 128>}, {transform_indices = @transform_2, window_bounds = array<i64: 8, 128>}, {transform_indices = @transform_3, window_bounds = array<i64: 8, 128>}]} {
    %c0_i32 = arith.constant 0 : i32
    %0 = arith.cmpi eq, %arg1, %c0_i32 : i32
    %1 = arith.extui %0 : i1 to i32
    %c0_i32_0 = arith.constant 0 : i32
    %2 = arith.cmpi ne, %1, %c0_i32_0 : i32
    scf.if %2 {
      %cst_16 = arith.constant 0.000000e+00 : f32
      %24 = vector.broadcast %cst_16 : f32 to vector<8x128xf32>
      %c0_17 = arith.constant 0 : index
      %c0_18 = arith.constant 0 : index
      %25 = vector.load %arg4[%c0_17, %c0_18] : memref<8x128xf32, #tpu.memory_space<vmem>>, vector<8x128xf32>
      tpu.vector_store %arg4[%c0_17, %c0_18], %24 {strides = array<i32>} : memref<8x128xf32, #tpu.memory_space<vmem>>, vector<8x128xf32>,
      %cst_19 = arith.constant 0.000000e+00 : f32
      %26 = vector.broadcast %cst_19 : f32 to vector<8x128xf32>
      %c0_20 = arith.constant 0 : index
      %c0_21 = arith.constant 0 : index
      %27 = vector.load %arg5[%c0_20, %c0_21] : memref<8x128xf32, #tpu.memory_space<vmem>>, vector<8x128xf32>
      tpu.vector_store %arg5[%c0_20, %c0_21], %26 {strides = array<i32>} : memref<8x128xf32, #tpu.memory_space<vmem>>, vector<8x128xf32>,
    } else {
    }
    %c0 = arith.constant 0 : index
    %c0_1 = arith.constant 0 : index
    %3 = vector.load %arg2[%c0, %c0_1] : memref<16x128xf32, #tpu.memory_space<vmem>>, vector<16x128xf32>
    %cst = arith.constant 5.000000e-01 : f32
    %4 = vector.broadcast %cst : f32 to vector<16x128xf32>
    %5 = arith.mulf %4, %3 : vector<16x128xf32>
    %6 = math.tanh %5 : vector<16x128xf32>
    %cst_2 = arith.constant 5.000000e-01 : f32
    %7 = vector.broadcast %cst_2 : f32 to vector<16x128xf32>
    %8 = arith.mulf %7, %6 : vector<16x128xf32>
    %cst_3 = arith.constant 5.000000e-01 : f32
    %9 = vector.broadcast %cst_3 : f32 to vector<16x128xf32>
    %10 = arith.addf %8, %9 : vector<16x128xf32>
    %c0_4 = arith.constant 0 : index
    %c0_5 = arith.constant 0 : index
    %11 = vector.load %arg3[%c0_4, %c0_5] : memref<16x128xf32, #tpu.memory_space<vmem>>, vector<16x128xf32>
    %c0_6 = arith.constant 0 : index
    %c0_7 = arith.constant 0 : index
    %12 = vector.load %arg4[%c0_6, %c0_7] : memref<8x128xf32, #tpu.memory_space<vmem>>, vector<8x128xf32>
    %13 = arith.mulf %10, %11 : vector<16x128xf32>
    %14 = vector.shape_cast %13 : vector<16x128xf32> to vector<2x8x128xf32>
    %cst_8 = arith.constant dense<0.000000e+00> : vector<8x128xf32>
    %15 = vector.multi_reduction <add>, %14, %cst_8 [0] : vector<2x8x128xf32> to vector<8x128xf32>
    %16 = arith.addf %12, %15 : vector<8x128xf32>
    %c0_9 = arith.constant 0 : index
    %c0_10 = arith.constant 0 : index
    %17 = vector.load %arg4[%c0_9, %c0_10] : memref<8x128xf32, #tpu.memory_space<vmem>>, vector<8x128xf32>
    tpu.vector_store %arg4[%c0_9, %c0_10], %16 {strides = array<i32>} : memref<8x128xf32, #tpu.memory_space<vmem>>, vector<8x128xf32>,
    %c0_11 = arith.constant 0 : index
    %c0_12 = arith.constant 0 : index
    %18 = vector.load %arg5[%c0_11, %c0_12] : memref<8x128xf32, #tpu.memory_space<vmem>>, vector<8x128xf32>
    %19 = arith.addf %10, %11 : vector<16x128xf32>
    %20 = vector.shape_cast %19 : vector<16x128xf32> to vector<2x8x128xf32>
    %cst_13 = arith.constant dense<0.000000e+00> : vector<8x128xf32>
    %21 = vector.multi_reduction <add>, %20, %cst_13 [0] : vector<2x8x128xf32> to vector<8x128xf32>
    %22 = arith.addf %18, %21 : vector<8x128xf32>
    %c0_14 = arith.constant 0 : index
    %c0_15 = arith.constant 0 : index
    %23 = vector.load %arg5[%c0_14, %c0_15] : memref<8x128xf32, #tpu.memory_space<vmem>>, vector<8x128xf32>
    tpu.vector_store %arg5[%c0_14, %c0_15], %22 {strides = array<i32>} : memref<8x128xf32, #tpu.memory_space<vmem>>, vector<8x128xf32>,
    return
  }
  func.func @transform_0(%arg0: i32, %arg1: i32) -> (i32, i32) {
    %c1_i32 = arith.constant 1 : i32
    %0 = arith.muli %arg0, %c1_i32 : i32
    %1 = arith.addi %0, %arg1 : i32
    %c0_i32 = arith.constant 0 : i32
    %c0_i32_0 = arith.constant 0 : i32
    return %1, %c0_i32 : i32, i32
  }
  func.func @transform_1(%arg0: i32, %arg1: i32) -> (i32, i32) {
    %c1_i32 = arith.constant 1 : i32
    %0 = arith.muli %arg0, %c1_i32 : i32
    %1 = arith.addi %0, %arg1 : i32
    %c0_i32 = arith.constant 0 : i32
    %c0_i32_0 = arith.constant 0 : i32
    return %1, %c0_i32 : i32, i32
  }
  func.func @transform_2(%arg0: i32, %arg1: i32) -> (i32, i32) {
    %c0_i32 = arith.constant 0 : i32
    %c0_i32_0 = arith.constant 0 : i32
    return %arg0, %c0_i32 : i32, i32
  }
  func.func @transform_3(%arg0: i32, %arg1: i32) -> (i32, i32) {
    %c0_i32 = arith.constant 0 : i32
    %c0_i32_0 = arith.constant 0 : i32
    return %arg0, %c0_i32 : i32, i32
  }
}

</mosaic_0001>

<llo_original>
// kernel: dice_loss.1
$region0: #{dice_loss.1}
  #allocation0 [shape = 'u32[]', space=smem, size = 0x4, offset = 0x4, fixed_abs, tag = 'smem constant byte address 0x4 - core index']
  #allocation1 [shape = 'u32[144,128]{1,0:T(1,128)}', space=vmem, size = 0x12000, scoped, tag = 'internal scratch']
  %s0 = inlined_call_operand.vmem [shape: f32[16,128], index: 0, kind: input, shape index: {}]
  %s1 = inlined_call_operand.vmem [shape: f32[16,128], index: 1, kind: input, shape index: {}]
  %s2 = inlined_call_operand.vmem [shape: f32[8,128], index: 2, kind: output, shape index: {0}]
  %s3 = inlined_call_operand.vmem [shape: f32[8,128], index: 3, kind: output, shape index: {1}]
  %4 = xla_tuple %s2, %s3
  %s5 = sld [smem:[#allocation0]]
  $region30: #{dice_loss.1} parent=0
    _
  %s7 = ssub.s32 1, %s5
  %s8 = scalar_select 0, %s7, %s5
  // Predicated region
  $region2: #{dice_loss.1} parent=0 // pred_check
    _
  $region3: #{dice_loss.1} parent=0 // pred_check_branch
    %10 = sbr.rel (0) target = $region5
  $region4: #{dice_loss.1} parent=0 // pred_region
    %s11 = sadd.s32 0, 0
    %s12 = smul.u32 2, %s11
    %p13 = scmp.lt.s32.totalorder %s12, 1
    %s14 = scalar_select %p13, %s12, 1
    %s15 = smul.addr %s14, 8
    %s16 = scalar_lea.vmem %s0, %s15
    %s17 = sadd.s32 0, 0
    %s18 = smul.u32 2, %s17
  $region5: #{dice_loss.1} parent=0 // pred_fallthru
    _
  // Predicated region
  $region6: #{dice_loss.1} parent=0 // pred_check
    _
  $region7: #{dice_loss.1} parent=0 // pred_check_branch
    %20 = sbr.rel (0) target = $region9
  $region8: #{dice_loss.1} parent=0 // pred_region
    %s21 = sadd.s32 0, 0
    %s22 = smul.u32 2, %s21
    %p23 = scmp.lt.s32.totalorder %s22, 1
    %s24 = scalar_select %p23, %s22, 1
    %s25 = smul.addr %s24, 8
    %s26 = scalar_lea.vmem %s1, %s25
    %s27 = sadd.s32 0, 0
    %s28 = smul.u32 2, %s27
  $region9: #{dice_loss.1} parent=0 // pred_fallthru
    _
  %s29 = sadd.s32 0, 0
  %s30 = smul.u32 2, %s29
  %p31 = scmp.lt.s32.totalorder %s30, 1
  %s32 = scalar_select %p31, %s30, 1
  %s33 = smul.addr %s32, 8
  %s34 = scalar_lea.vmem %s0, %s33
  %s35 = sadd.s32 0, 0
  %s36 = smul.u32 2, %s35
  %p37 = scmp.lt.s32.totalorder %s36, 1
  %s38 = scalar_select %p37, %s36, 1
  %s39 = smul.addr %s38, 8
  %s40 = scalar_lea.vmem %s1, %s39
  %s41 = sadd.s32 0, 0
  %s42 = smul.u32 2, %s41
  %p43 = scmp.lt.s32.totalorder %s42, 1
  %s44 = scalar_select %p43, %s42, 1
  %s45 = smul.addr %s44, 8
  %s46 = scalar_lea.vmem %s0, %s45
  %s47 = sadd.s32 0, 0
  %s48 = smul.u32 2, %s47
  %s49 = sadd.s32 0, 0
  %s50 = smul.u32 2, %s49
  %p51 = scmp.lt.s32.totalorder %s50, 1
  %s52 = scalar_select %p51, %s50, 1
  %s53 = smul.addr %s52, 8
  %s54 = scalar_lea.vmem %s1, %s53
  %s55 = sadd.s32 0, 0
  %s56 = smul.u32 2, %s55
  %p57 = scmp.eq.s32.totalorder 0, 0
  // Predicated region
  $region10: #{dice_loss.1} parent=0 // pred_check
    %p58 = pneg %p57
  $region11: #{dice_loss.1} parent=0 // pred_check_branch
    %60 = sbr.rel (%p58) target = $region13
  $region12: #{dice_loss.1} parent=0 // pred_region
    %61 = vst [vmem:[%s2] sm:$0xff] 0.0
    %62 = vst [vmem:[%s3] sm:$0xff] 0.0
  $region13: #{dice_loss.1} parent=0 // pred_fallthru
    _
  %v63 = vld [vmem:[%s46] sm:$0xff]
  %v64 = vld [vmem:[%s46 + $0x8] sm:$0xff]
  %v65 = vmul.f32 %v63, 0.5
  %v66 = vmul.f32 %v64, 0.5
  %v67 = vtanh.pop %v65
  %v68 = vtanh.pop %v66
  %v69 = vmul.f32 %v67, 0.5
  %v70 = vmul.f32 %v68, 0.5
  %v71 = vadd.f32 %v69, 0.5
  %v72 = vadd.f32 %v70, 0.5
  %v73 = vld [vmem:[%s54] sm:$0xff]
  %v74 = vld [vmem:[%s54 + $0x8] sm:$0xff]
  %v75 = vld [vmem:[%s2] sm:$0xff]
  %v76 = vmul.f32 %v71, %v73
  %v77 = vmul.f32 %v72, %v74
  %v78 = vadd.f32 %v76, %v77
  %v79 = vadd.f32 %v75, %v78
  %80 = vst [vmem:[%s2] sm:$0xff] %v79
  %v81 = vld [vmem:[%s3] sm:$0xff]
  %v82 = vadd.f32 %v71, %v73
  %v83 = vadd.f32 %v72, %v74
  %v84 = vadd.f32 %v82, %v83
  %v85 = vadd.f32 %v81, %v84
  %86 = vst [vmem:[%s3] sm:$0xff] %v85
  // Predicated region
  $region14: #{dice_loss.1} parent=0 // pred_check
    _
  $region15: #{dice_loss.1} parent=0 // pred_check_branch
    %88 = sbr.rel (0) target = $region17
  $region16: #{dice_loss.1} parent=0 // pred_region
    _
  $region17: #{dice_loss.1} parent=0 // pred_fallthru
    _
  // Predicated region
  $region18: #{dice_loss.1} parent=0 // pred_check
    _
  $region19: #{dice_loss.1} parent=0 // pred_check_branch
    %90 = sbr.rel (0) target = $region21
  $region20: #{dice_loss.1} parent=0 // pred_region
    _
  $region21: #{dice_loss.1} parent=0 // pred_fallthru
    _
  // Predicated region
  $region22: #{dice_loss.1} parent=0 // pred_check
    _
  $region23: #{dice_loss.1} parent=0 // pred_check_branch
    %92 = sbr.rel (0) target = $region25
  $region24: #{dice_loss.1} parent=0 // pred_region
    _
  $region25: #{dice_loss.1} parent=0 // pred_fallthru
    _
  // Predicated region
  $region26: #{dice_loss.1} parent=0 // pred_check
    _
  $region27: #{dice_loss.1} parent=0 // pred_check_branch
    %94 = sbr.rel (0) target = $region29
  $region28: #{dice_loss.1} parent=0 // pred_region
    _
  $region29: #{dice_loss.1} parent=0 // pred_fallthru
    _

</llo_original>
